<compile_context>
chip_gen: v5e
topology: v5e:2x2
jax: 0.10.0
libtpu: 0.0.40
codegen_flags: <defaults>
</compile_context>

<pallas_src>
import jax
import jax.numpy as jnp
from jax.experimental import pallas as pl
from jax.experimental.pallas import tpu as pltpu

N_FEATURES = 10
HIDDEN_SIZE = 16
OUTPUT_DIM = 2

# Packed-parameter slab layout (float32, one DMA):
#   rows [0, 10)   cols [0, 16) : w1   (10 x 16)
#   row  10        cols [0, 16) : b1   (16,)
#   rows [16, 32)  cols [0, 2)  : w2   (16 x 2)   (sublane-aligned start row)
#   row  32        cols [0, 2)  : b2   (2,)
B1_ROW = N_FEATURES
W2_ROW0 = 16
B2_ROW = W2_ROW0 + HIDDEN_SIZE
SLAB_ROWS = B2_ROW + 1           # 33
SLAB_COLS = HIDDEN_SIZE          # 16

# Large-batch tiling parameters.
_BATCH_TILE = 8192               # ~16 MiB double-buffered x+out at f32 (lane-padded)
_MIN_TILED_STEPS = 4             # only tile when the grid has >= 4 steps
_TILED_THRESHOLD = _MIN_TILED_STEPS * _BATCH_TILE
_VMEM_LIMIT_BYTES = 40 * 1024 * 1024


def _mlp_kernel(x_ref, p_ref, o_ref):
    """relu(x @ w1 + b1) @ w2 + b2 — two MXU dots + two broadcast VPU adds."""
    x = x_ref[...]                                            # [B, 10] (f32 or bf16)
    p = p_ref[...]                                            # [33, 16] f32 slab
    w1 = p[:N_FEATURES, :HIDDEN_SIZE].astype(x.dtype)         # [10, 16]
    b1 = p[B1_ROW:B1_ROW + 1, :HIDDEN_SIZE]                   # [1, 16] f32
    w2 = p[W2_ROW0:W2_ROW0 + HIDDEN_SIZE, :OUTPUT_DIM]        # [16, 2] f32
    b2 = p[B2_ROW:B2_ROW + 1, :OUTPUT_DIM]                    # [1, 2]  f32

    h = jnp.dot(x, w1, preferred_element_type=jnp.float32) + b1
    h = jnp.maximum(h, 0.0)                                   # [B, 16] f32
    y = jnp.dot(h, w2, preferred_element_type=jnp.float32) + b2
    o_ref[...] = y.astype(o_ref.dtype)                        # [B, 2]


def pack_params(w1, b1, w2, b2):
    """Pack (w1, b1, w2, b2) into one f32 slab consumed by the kernel."""
    w1 = jnp.asarray(w1, jnp.float32)
    b1 = jnp.asarray(b1, jnp.float32).reshape(HIDDEN_SIZE)
    w2 = jnp.asarray(w2, jnp.float32)
    b2 = jnp.asarray(b2, jnp.float32).reshape(OUTPUT_DIM)

    slab = jnp.zeros((SLAB_ROWS, SLAB_COLS), jnp.float32)
    slab = slab.at[:N_FEATURES, :HIDDEN_SIZE].set(w1)
    slab = slab.at[B1_ROW, :HIDDEN_SIZE].set(b1)
    slab = slab.at[W2_ROW0:W2_ROW0 + HIDDEN_SIZE, :OUTPUT_DIM].set(w2)
    slab = slab.at[B2_ROW, :OUTPUT_DIM].set(b2)
    return slab


def _cost_estimate(batch, x_itemsize):
    flops = 2 * batch * (N_FEATURES * HIDDEN_SIZE + HIDDEN_SIZE * OUTPUT_DIM)
    bytes_accessed = (batch * N_FEATURES * x_itemsize
                      + batch * OUTPUT_DIM * 4
                      + SLAB_ROWS * SLAB_COLS * 4)
    return pl.CostEstimate(flops=flops, transcendentals=0,
                           bytes_accessed=bytes_accessed)


def _forward_single(x, params):
    """Gridless call: whole arrays in VMEM, one DMA per operand, no grid machinery."""
    batch = x.shape[0]
    return pl.pallas_call(
        _mlp_kernel,
        out_shape=jax.ShapeDtypeStruct((batch, OUTPUT_DIM), jnp.float32),
        in_specs=[
            pl.BlockSpec(memory_space=pltpu.MemorySpace.VMEM),
            pl.BlockSpec(memory_space=pltpu.MemorySpace.VMEM),
        ],
        out_specs=pl.BlockSpec(memory_space=pltpu.MemorySpace.VMEM),
        cost_estimate=_cost_estimate(batch, jnp.dtype(x.dtype).itemsize),
    )(x, params)


def _forward_tiled(x, params, tb=_BATCH_TILE, vmem_limit_bytes=_VMEM_LIMIT_BYTES):
    """Batch-tiled path for large B: x/out tiled along batch, slab VMEM-resident."""
    batch = x.shape[0]
    return pl.pallas_call(
        _mlp_kernel,
        out_shape=jax.ShapeDtypeStruct((batch, OUTPUT_DIM), jnp.float32),
        grid_spec=pl.GridSpec(
            grid=(pl.cdiv(batch, tb),),
            in_specs=[
                pl.BlockSpec((tb, N_FEATURES), lambda i: (i, 0)),
                pl.BlockSpec((SLAB_ROWS, SLAB_COLS), lambda i: (0, 0)),
            ],
            out_specs=pl.BlockSpec((tb, OUTPUT_DIM), lambda i: (i, 0)),
        ),
        compiler_params=pltpu.CompilerParams(
            dimension_semantics=("parallel",),
            vmem_limit_bytes=vmem_limit_bytes,
        ),
        cost_estimate=_cost_estimate(batch, jnp.dtype(x.dtype).itemsize),
    )(x, params)


def net_forward(x, params, cast_inputs_to_bf16=False):
    """Forward pass of Net: relu(x @ W1 + b1) @ W2 + b2.

    x:      [B, N_FEATURES] float32
    params: [SLAB_ROWS, SLAB_COLS] float32 from pack_params().
    cast_inputs_to_bf16: halve input HBM traffic on the (memory-bound)
        large-batch path; relaxes exact f32 parity, off by default.
    """
    x = jnp.asarray(x, jnp.float32)
    batch = x.shape[0]
    if batch < _TILED_THRESHOLD:
        return _forward_single(x, params)
    if cast_inputs_to_bf16:
        x = x.astype(jnp.bfloat16)
    return _forward_tiled(x, params)


def init_params(key, scale=0.01):
    """Deterministic uniform(-scale, scale) init, mirroring initialize_weights."""
    k1, k2, k3, k4 = jax.random.split(key, 4)
    w1 = jax.random.uniform(k1, (N_FEATURES, HIDDEN_SIZE), jnp.float32,
                            minval=-scale, maxval=scale)
    b1 = jax.random.uniform(k2, (1, HIDDEN_SIZE), jnp.float32,
                            minval=-scale, maxval=scale)
    w2 = jax.random.uniform(k3, (HIDDEN_SIZE, OUTPUT_DIM), jnp.float32,
                            minval=-scale, maxval=scale)
    b2 = jax.random.uniform(k4, (1, OUTPUT_DIM), jnp.float32,
                            minval=-scale, maxval=scale)
    return w1, b1, w2, b2


if __name__ == "__main__":
    # Same one-hot-ish inputs as the PyTorch script: shape [8, 10].
    inputs = jnp.array(
        [[1, 1, 1, 0, 0, 0, 0, 0, 0, 0],
         [1, 1, 0, 1, 0, 0, 0, 0, 0, 0],
         [1, 1, 0, 0, 1, 0, 0, 0, 0, 0],
         [1, 1, 0, 0, 0, 1, 0, 0, 0, 0],
         [1, 1, 0, 0, 0, 0, 1, 0, 0, 0],
         [1, 1, 0, 0, 0, 0, 0, 1, 0, 0],
         [1, 1, 0, 0, 0, 0, 0, 0, 1, 0],
         [1, 1, 0, 0, 0, 0, 0, 0, 0, 1]],
        dtype=jnp.float32,
    )

    key = jax.random.PRNGKey(0)
    w1, b1, w2, b2 = init_params(key)
    params = pack_params(w1, b1, w2, b2)

    def reference(x):
        return jnp.maximum(x @ w1 + b1, 0.0) @ w2 + b2

    # --- Gridless (small-batch) path: exercised by the actual module shapes.
    out = jax.block_until_ready(net_forward(inputs, params))
    ref = reference(inputs)
    assert out.shape == (8, OUTPUT_DIM)
    assert jnp.allclose(out, ref, atol=1e-6, rtol=1e-6)

    # --- Tiled path sanity check, including a ragged last batch tile
    #     (batch % tb != 0): masked writeback must not leak garbage rows.
    xb = jax.random.normal(jax.random.PRNGKey(1), (100, N_FEATURES), jnp.float32)
    out_tiled = jax.block_until_ready(_forward_tiled(xb, params, tb=48))
    assert jnp.allclose(out_tiled, reference(xb), atol=1e-6, rtol=1e-6)

    print("KERNEL_OK")
</pallas_src>

<mosaic_0001>
module attributes {stable_mosaic.version = 11 : i64} {
  func.func @_mlp_kernel(%arg0: memref<8x10xf32, #tpu.memory_space<vmem>>, %arg1: memref<33x16xf32, #tpu.memory_space<vmem>>, %arg2: memref<8x2xf32, #tpu.memory_space<vmem>>) attributes {dimension_semantics = [], scalar_prefetch = 0 : i64, scratch_operands = 0 : i64, tpu.core_type = #tpu.core_type<tc>} {
    %c0 = arith.constant 0 : index
    %c0_0 = arith.constant 0 : index
    %0 = vector.load %arg0[%c0, %c0_0] : memref<8x10xf32, #tpu.memory_space<vmem>>, vector<8x10xf32>
    %c0_1 = arith.constant 0 : index
    %c0_2 = arith.constant 0 : index
    %1 = vector.load %arg1[%c0_1, %c0_2] : memref<33x16xf32, #tpu.memory_space<vmem>>, vector<33x16xf32>
    %2 = vector.extract_strided_slice %1 {offsets = [0, 0], sizes = [10, 16], strides = [1, 1]} : vector<33x16xf32> to vector<10x16xf32>
    %3 = vector.extract_strided_slice %1 {offsets = [10, 0], sizes = [1, 16], strides = [1, 1]} : vector<33x16xf32> to vector<1x16xf32>
    %4 = vector.extract_strided_slice %1 {offsets = [16, 0], sizes = [16, 2], strides = [1, 1]} : vector<33x16xf32> to vector<16x2xf32>
    %5 = vector.extract_strided_slice %1 {offsets = [32, 0], sizes = [1, 2], strides = [1, 1]} : vector<33x16xf32> to vector<1x2xf32>
    %cst = arith.constant dense<0.000000e+00> : vector<8x16xf32>
    %6 = tpu.matmul %0, %2, %cst {dimension_numbers = #tpu.dot_dimension_numbers<[1], [0], [0], [1], [0, 0, 1, 1], [], []>} : vector<8x10xf32>, vector<10x16xf32>, vector<8x16xf32> -> vector<8x16xf32>
    %7 = vector.broadcast %3 : vector<1x16xf32> to vector<8x16xf32>
    %8 = arith.addf %6, %7 : vector<8x16xf32>
    %cst_3 = arith.constant 0.000000e+00 : f32
    %9 = vector.broadcast %cst_3 : f32 to vector<8x16xf32>
    %10 = arith.maximumf %8, %9 : vector<8x16xf32>
    %cst_4 = arith.constant dense<0.000000e+00> : vector<8x2xf32>
    %11 = tpu.matmul %10, %4, %cst_4 {dimension_numbers = #tpu.dot_dimension_numbers<[1], [0], [0], [1], [0, 0, 1, 1], [], []>} : vector<8x16xf32>, vector<16x2xf32>, vector<8x2xf32> -> vector<8x2xf32>
    %12 = vector.broadcast %5 : vector<1x2xf32> to vector<8x2xf32>
    %13 = arith.addf %11, %12 : vector<8x2xf32>
    %c0_5 = arith.constant 0 : index
    %c0_6 = arith.constant 0 : index
    %14 = vector.load %arg2[%c0_5, %c0_6] : memref<8x2xf32, #tpu.memory_space<vmem>>, vector<8x2xf32>
    tpu.vector_store %arg2[%c0_5, %c0_6], %13 {strides = array<i32>} : memref<8x2xf32, #tpu.memory_space<vmem>>, vector<8x2xf32>,
    return
  }
}

</mosaic_0001>

<llo_original>
// kernel: tpu_custom_call.1
$region0: #{tpu_custom_call.1}
  #allocation0 [shape = 'u32[]', space=smem, size = 0x4, offset = 0x4, fixed_abs, tag = 'smem constant byte address 0x4 - core index']
  #allocation1 [shape = 'u32[72,128]{1,0:T(1,128)}', space=vmem, size = 0x9000, scoped, tag = 'internal scratch']
  %s0 = inlined_call_operand.vmem [shape: f32[8,10], index: 0, kind: input, shape index: {}]
  %s1 = inlined_call_operand.vmem [shape: f32[33,16], index: 1, kind: input, shape index: {}]
  %s2 = inlined_call_operand.vmem [shape: f32[8,2], index: 2, kind: output, shape index: {}]
  %s3 = sld [smem:[#allocation0]]
  $region18: #{tpu_custom_call.1} parent=0
    _
  %s5 = ssub.s32 1, %s3
  %s6 = scalar_select 0, %s5, %s3
  // Predicated region
  $region2: #{tpu_custom_call.1} parent=0 // pred_check
    _
  $region3: #{tpu_custom_call.1} parent=0 // pred_check_branch
    %8 = sbr.rel (0) target = $region5
  $region4: #{tpu_custom_call.1} parent=0 // pred_region
    _
  $region5: #{tpu_custom_call.1} parent=0 // pred_fallthru
    _
  // Predicated region
  $region6: #{tpu_custom_call.1} parent=0 // pred_check
    _
  $region7: #{tpu_custom_call.1} parent=0 // pred_check_branch
    %10 = sbr.rel (0) target = $region9
  $region8: #{tpu_custom_call.1} parent=0 // pred_region
    _
  $region9: #{tpu_custom_call.1} parent=0 // pred_fallthru
    _
  %v11 = vld [vmem:[%s0] sm:$0xff]
  %v12 = vld [vmem:[%s1] sm:$0xff]
  %v13 = vld [vmem:[%s1 + $0x8] sm:$0xff]
  %v14 = vld [vmem:[%s1 + $0x10] sm:$0xff]
  %v15 = vld [vmem:[%s1 + $0x18] sm:$0xff]
  %v16 = vld [vmem:[%s1 + $0x20] sm:$0x1]
  %v17 = vperm.slane %v13, 2
  %vm18 = vcmask 80896
  %v20 = vsel %vm18, %v11, 0
  %vm22 = vcmask 1041408
  %v24 = vsel %vm22, %v13, 0
  %26 = vmatpush.msra.mxu0 0.0
  %27 = vmatpush.msra.mxu0 0.0
  %28 = vmatpush.msra.mxu0 0.0
  %29 = vmatpush.msra.mxu0 0.0
  %30 = vmatpush.msra.mxu0 0.0
  %31 = vmatpush.msra.mxu0 0.0
  %32 = vmatpush.msra.mxu0 0.0
  %33 = vmatpush.msra.mxu0 0.0
  %34 = vmatpush.msra.mxu0 0.0
  %35 = vmatpush.msra.mxu0 0.0
  %36 = vmatpush.msra.mxu0 0.0
  %37 = vmatpush.msra.mxu0 0.0
  %38 = vmatpush.msra.mxu0 0.0
  %39 = vmatpush.msra.mxu0 0.0
  %40 = vmatpush.msra.mxu0 %v24
  %41 = vmatpush.msra.mxu0 %v12
  %42 = vmatmul.f32.gmra.mxu0 %v20
  %v43 = vpop.f32.mrf.mxu0
  %v44 = vadd.f32 %v17, %v43
  %45 = vdwg.mxu0
  %v46 = vmax.f32 %v44, 0.0
  %v47 = vperm.slane %v16, 0
  %vm48 = vcmask 130048
  %v50 = vsel %vm48, %v46, 0
  %52 = vmatpush.msra.mxu0 0.0
  %53 = vmatpush.msra.mxu0 0.0
  %54 = vmatpush.msra.mxu0 0.0
  %55 = vmatpush.msra.mxu0 0.0
  %56 = vmatpush.msra.mxu0 0.0
  %57 = vmatpush.msra.mxu0 0.0
  %58 = vmatpush.msra.mxu0 0.0
  %59 = vmatpush.msra.mxu0 0.0
  %60 = vmatpush.msra.mxu0 0.0
  %61 = vmatpush.msra.mxu0 0.0
  %62 = vmatpush.msra.mxu0 0.0
  %63 = vmatpush.msra.mxu0 0.0
  %64 = vmatpush.msra.mxu0 0.0
  %65 = vmatpush.msra.mxu0 0.0
  %66 = vmatpush.msra.mxu0 %v15
  %67 = vmatpush.msra.mxu0 %v14
  %68 = vmatmul.f32.gmra.mxu0 %v50
  %v69 = vpop.f32.mrf.mxu0
  %v70 = vadd.f32 %v47, %v69
  %71 = vdwg.mxu0
  %vm72 = vcmask 15360
  %73 = vst.msk [vmem:[%s2] sm:$0xff] %vm72, %v70
  // Predicated region
  $region10: #{tpu_custom_call.1} parent=0 // pred_check
    _
  $region11: #{tpu_custom_call.1} parent=0 // pred_check_branch
    %75 = sbr.rel (0) target = $region13
  $region12: #{tpu_custom_call.1} parent=0 // pred_region
    _
  $region13: #{tpu_custom_call.1} parent=0 // pred_fallthru
    _
  // Predicated region
  $region14: #{tpu_custom_call.1} parent=0 // pred_check
    _
  $region15: #{tpu_custom_call.1} parent=0 // pred_check_branch
    %77 = sbr.rel (0) target = $region17
  $region16: #{tpu_custom_call.1} parent=0 // pred_region
    _
  $region17: #{tpu_custom_call.1} parent=0 // pred_fallthru
    _

</llo_original>
